<compile_context>
chip_gen: v5e
topology: v5e:2x2
jax: 0.10.0
libtpu: 0.0.40
codegen_flags: <defaults>
</compile_context>

<pallas_src>
import functools

import jax
import jax.numpy as jnp
from jax.experimental import pallas as pl
from jax.experimental.pallas import tpu as pltpu


def _round_up(x, m):
    return ((x + m - 1) // m) * m


def _attention_kernel(fout, pack, *refs):
    if pack > 1:
        (hi_ref, hj_ref, whi_ref, whji_ref, wj_ref, bi_ref, bj_ref,
         out_ref, pk_ref) = refs
    else:
        (hi_ref, hj_ref, whi_ref, whji_ref, wj_ref, bi_ref, bj_ref,
         out_ref) = refs
        pk_ref = None

    cdt = whi_ref.dtype
    hi = hi_ref[...].astype(cdt)                 # [tn, F_i]  (cast is a free VPU op)
    hj = hj_ref[...].astype(cdt)                 # [tn, F_j]

    # net_i logits and net_j output; f32 accumulation on the MXU.
    zi = (jnp.dot(hi, whi_ref[...], preferred_element_type=jnp.float32)
          + jnp.dot(hj, whji_ref[...], preferred_element_type=jnp.float32)
          + bi_ref[...])                          # [tn, F_out]
    zj = (jnp.dot(hj, wj_ref[...], preferred_element_type=jnp.float32)
          + bj_ref[...])                          # [tn, F_out]

    # Softmax over the feature axis (torch dim=1), numerically stabilized, f32.
    m = jnp.max(zi, axis=1, keepdims=True)
    e = jnp.exp(zi - m)
    s = jnp.sum(e, axis=1, keepdims=True)
    r = pl.reciprocal(s, approx=True)            # EUP slot (idle after exp)
    r = r * (2.0 - s * r)                        # one Newton step on the [tn,1] column

    vals = (e * zj * r).astype(out_ref.dtype)    # [tn, F_out]

    if pack == 1:
        out_ref[...] = vals
    else:
        # Lane-dense store: pack `pack` consecutive rows into one output row so
        # the write-back is full-lane-width (unmasked vst, 4x smaller out
        # buffer for F_out=32).  Row-major packing -> wrapper reshape is free.
        pk_ref[...] = vals
        tpp = out_ref.shape[0]                   # tile_n // pack (static)
        pieces = [pk_ref[pl.ds(k, tpp, stride=pack), :] for k in range(pack)]
        out_ref[...] = jnp.concatenate(pieces, axis=1)


def potentialnet_attention(h_i, h_j, w_i, b_i, w_j, b_j, *,
                           tile_n=4096, compute_dtype=None, out_dtype=None):
    """out = softmax(net_i(cat([h_i, h_j], 1)), dim=1) * net_j(h_j).

    Weights are "math-style": w_i [F_i+F_j, F_out], w_j [F_j, F_out], biases
    broadcastable to [1, F_out] (transpose of torch's Linear.weight).
    """
    n, fi = h_i.shape
    n2, fj = h_j.shape
    assert n2 == n, "h_i / h_j row mismatch"
    fout = w_j.shape[1]
    assert w_i.shape == (fi + fj, fout)

    in_dtype = jnp.result_type(h_i.dtype, h_j.dtype)
    compute_dtype = jnp.dtype(in_dtype if compute_dtype is None else compute_dtype)
    out_dtype = jnp.dtype(in_dtype if out_dtype is None else out_dtype)

    # Lane-dense output packing factor (pack rows per 128-lane output row).
    pack = 128 // fout if (fout < 128 and 128 % fout == 0) else 1
    pack = min(pack, 8)        # keep sublane-strided reads cheap

    def _row_align(dt):        # sublane multiple: 8 for 4-byte dtypes, 16 for 2-byte
        return max(8, 32 // max(1, jnp.dtype(dt).itemsize))

    row_mult = max(_row_align(in_dtype), pack * _row_align(out_dtype))

    # Clamp / align the row tile.  NO padding of the arrays: the grid uses cdiv
    # and Pallas masks the partial last block (reads of the tail are undefined
    # but per-row independent; tail writes are discarded).
    tile_n = _round_up(max(row_mult, min(int(tile_n), _round_up(n, row_mult))),
                       row_mult)

    # --- VMEM budget (lane-padded, double-buffered) -> auto-shrink + limit ----
    def _lanes(f):
        return _round_up(f, 128)

    def _vmem_bytes(tn):
        in_b = 2 * tn * (_lanes(fi) + _lanes(fj)) * jnp.dtype(in_dtype).itemsize
        out_b = 2 * (tn // pack) * _lanes(pack * fout) * out_dtype.itemsize
        scr_b = (tn * _lanes(fout) * out_dtype.itemsize) if pack > 1 else 0
        w_b = (2 * (_round_up(fi, 8) + 2 * _round_up(fj, 8) + 16)
               * _lanes(fout) * max(compute_dtype.itemsize, 4))
        return in_b + out_b + scr_b + w_b

    vmem_budget = 40 << 20     # conservative: leaves headroom on v5e/v6e/v7x
    while _vmem_bytes(tile_n) > vmem_budget and tile_n > row_mult:
        tile_n = max(row_mult, _round_up(tile_n // 2, row_mult))

    grid_n = pl.cdiv(n, tile_n)
    tpp = tile_n // pack
    n_pack_rows = (n + pack - 1) // pack

    try:
        phys_vmem = int(pltpu.get_tpu_info().vmem_capacity_bytes)
    except Exception:
        phys_vmem = 64 << 20   # v7x per-TC physical; safe lower bound
    vmem_limit = int(min(max(2 * _vmem_bytes(tile_n), 32 << 20),
                         max(32 << 20, int(0.9 * phys_vmem))))

    # Weights: split W_i in the wrapper (tiny, grid-invariant); matmul input
    # dtype follows compute_dtype.  Activations are streamed in their native
    # storage dtype (no wrapper cast -> no extra HBM traversal).
    w_hi = w_i[:fi, :].astype(compute_dtype)      # [F_i, F_out]
    w_hji = w_i[fi:, :].astype(compute_dtype)     # [F_j, F_out] (net_i, h_j half)
    w_jj = w_j.astype(compute_dtype)              # [F_j, F_out]
    b_i2 = jnp.reshape(b_i, (1, fout)).astype(jnp.float32)
    b_j2 = jnp.reshape(b_j, (1, fout)).astype(jnp.float32)

    # Advisory cost estimate (no pad/cast/slice passes anymore).
    flops = 2 * n * fout * (fi + 2 * fj) + 6 * n * fout
    transcendentals = n * fout + n
    bytes_accessed = (jnp.dtype(in_dtype).itemsize * n * (fi + fj)
                      + compute_dtype.itemsize * (fi + 2 * fj) * fout
                      + 4 * 2 * fout
                      + out_dtype.itemsize * n * fout)
    cost = pl.CostEstimate(flops=int(flops),
                           transcendentals=int(transcendentals),
                           bytes_accessed=int(bytes_accessed))

    kernel = functools.partial(_attention_kernel, fout, pack)
    scratch = [pltpu.VMEM((tile_n, fout), out_dtype)] if pack > 1 else []

    if pack > 1:
        out_shape = jax.ShapeDtypeStruct((n_pack_rows, pack * fout), out_dtype)
        out_spec = pl.BlockSpec((tpp, pack * fout), lambda i: (i, 0))
    else:
        out_shape = jax.ShapeDtypeStruct((n, fout), out_dtype)
        out_spec = pl.BlockSpec((tile_n, fout), lambda i: (i, 0))

    out = pl.pallas_call(
        kernel,
        out_shape=out_shape,
        grid_spec=pltpu.PrefetchScalarGridSpec(
            num_scalar_prefetch=0,
            grid=(grid_n,),
            in_specs=[
                pl.BlockSpec((tile_n, fi), lambda i: (i, 0)),   # h_i rows (streamed)
                pl.BlockSpec((tile_n, fj), lambda i: (i, 0)),   # h_j rows (streamed)
                pl.BlockSpec((fi, fout), lambda i: (0, 0)),     # W_i[:F_i]   (invariant)
                pl.BlockSpec((fj, fout), lambda i: (0, 0)),     # W_i[F_i:]   (invariant)
                pl.BlockSpec((fj, fout), lambda i: (0, 0)),     # W_j         (invariant)
                pl.BlockSpec((1, fout), lambda i: (0, 0)),      # b_i
                pl.BlockSpec((1, fout), lambda i: (0, 0)),      # b_j
            ],
            out_specs=out_spec,
            scratch_shapes=scratch,
        ),
        compiler_params=pltpu.CompilerParams(
            dimension_semantics=("parallel",),
            vmem_limit_bytes=vmem_limit),
        cost_estimate=cost,
    )(h_i, h_j, w_hi, w_hji, w_jj, b_i2, b_j2)

    if pack > 1:
        out = out.reshape(n_pack_rows * pack, fout)   # free metadata reshape
        if n_pack_rows * pack != n:
            out = out[:n]                             # copies only if N % pack != 0
    return out


def _torch_linear_init(key, fan_in, fan_out, dtype=jnp.float32):
    """Deterministic init mimicking torch.nn.Linear default (uniform +-1/sqrt(fan_in))."""
    kw, kb = jax.random.split(key)
    bound = 1.0 / jnp.sqrt(jnp.asarray(fan_in, dtype))
    w = jax.random.uniform(kw, (fan_in, fan_out), dtype, -bound, bound)
    b = jax.random.uniform(kb, (1, fan_out), dtype, -bound, bound)
    return w, b


def _reference(h_i, h_j, w_i, b_i, w_j, b_j):
    zi = jnp.concatenate([h_i, h_j], axis=1) @ w_i + b_i
    zj = h_j @ w_j + b_j
    return jax.nn.softmax(zi, axis=1) * zj


if __name__ == "__main__":
    key = jax.random.PRNGKey(0)

    # --- Case 1: small shapes, single (partial) tile --------------------------
    N, F_I, F_J, F_OUT = 16, 32, 32, 32
    k1, k2, k3, k4, key = jax.random.split(key, 5)
    h_i = jax.random.normal(k1, (N, F_I), jnp.float32)
    h_j = jax.random.normal(k2, (N, F_J), jnp.float32)
    w_i, b_i = _torch_linear_init(k3, F_I + F_J, F_OUT)
    w_j, b_j = _torch_linear_init(k4, F_J, F_OUT)

    out = jax.block_until_ready(potentialnet_attention(h_i, h_j, w_i, b_i, w_j, b_j))
    ref = _reference(h_i, h_j, w_i, b_i, w_j, b_j)
    assert out.shape == (N, F_OUT)
    assert jnp.allclose(out, ref, atol=1e-3, rtol=1e-3), "small-case mismatch"

    # --- Case 2: ragged N, multi-tile grid, masked partial last block ---------
    N2, F_I2, F_J2 = 300, 48, 32
    k1, k2, k3, k4, key = jax.random.split(key, 5)
    h_i2 = jax.random.normal(k1, (N2, F_I2), jnp.float32)
    h_j2 = jax.random.normal(k2, (N2, F_J2), jnp.float32)
    w_i2, b_i2 = _torch_linear_init(k3, F_I2 + F_J2, F_OUT)
    w_j2, b_j2 = _torch_linear_init(k4, F_J2, F_OUT)

    out2 = jax.block_until_ready(
        potentialnet_attention(h_i2, h_j2, w_i2, b_i2, w_j2, b_j2, tile_n=128))
    ref2 = _reference(h_i2, h_j2, w_i2, b_i2, w_j2, b_j2)
    assert out2.shape == (N2, F_OUT)
    assert jnp.allclose(out2, ref2, atol=1e-3, rtol=1e-3), "tiled-case mismatch"

    # --- Case 3: producer stores activations in bf16 (streamed as-is); f32
    #             accumulation + softmax inside the kernel -----------------------
    out3 = jax.block_until_ready(
        potentialnet_attention(h_i2.astype(jnp.bfloat16), h_j2.astype(jnp.bfloat16),
                               w_i2, b_i2, w_j2, b_j2, tile_n=128))
    rel = (jnp.linalg.norm(out3.astype(jnp.float32) - ref2)
           / (jnp.linalg.norm(ref2) + 1e-12))
    assert out3.shape == (N2, F_OUT)
    assert float(rel) < 5e-2, f"bf16-case relative error too large: {float(rel)}"

    print("KERNEL_OK")
</pallas_src>

<mosaic_0001>
module attributes {stable_mosaic.version = 11 : i64} {
  func.func @_attention_kernel(%arg0: i32, %arg1: memref<32x32xf32, #tpu.memory_space<vmem>>, %arg2: memref<32x32xf32, #tpu.memory_space<vmem>>, %arg3: memref<32x32xf32, #tpu.memory_space<vmem>>, %arg4: memref<32x32xf32, #tpu.memory_space<vmem>>, %arg5: memref<32x32xf32, #tpu.memory_space<vmem>>, %arg6: memref<1x32xf32, #tpu.memory_space<vmem>>, %arg7: memref<1x32xf32, #tpu.memory_space<vmem>>, %arg8: memref<8x128xf32, #tpu.memory_space<vmem>>, %arg9: memref<32x32xf32, #tpu.memory_space<vmem>>) attributes {dimension_semantics = [#tpu.dimension_semantics<parallel>], iteration_bounds = array<i64: 1>, scalar_prefetch = 0 : i64, scratch_operands = 1 : i64, tpu.core_type = #tpu.core_type<tc>, window_params = [{transform_indices = @transform_0, window_bounds = array<i64: 32, 32>}, {transform_indices = @transform_1, window_bounds = array<i64: 32, 32>}, {pipeline_mode = #tpu.pipeline_mode<synchronous>, transform_indices = @transform_2, window_bounds = array<i64: 32, 32>}, {pipeline_mode = #tpu.pipeline_mode<synchronous>, transform_indices = @transform_3, window_bounds = array<i64: 32, 32>}, {pipeline_mode = #tpu.pipeline_mode<synchronous>, transform_indices = @transform_4, window_bounds = array<i64: 32, 32>}, {pipeline_mode = #tpu.pipeline_mode<synchronous>, transform_indices = @transform_5, window_bounds = array<i64: 1, 32>}, {pipeline_mode = #tpu.pipeline_mode<synchronous>, transform_indices = @transform_6, window_bounds = array<i64: 1, 32>}, {transform_indices = @transform_7, window_bounds = array<i64: 8, 128>}]} {
    %c0 = arith.constant 0 : index
    %c0_0 = arith.constant 0 : index
    %0 = vector.load %arg1[%c0, %c0_0] : memref<32x32xf32, #tpu.memory_space<vmem>>, vector<32x32xf32>
    %c0_1 = arith.constant 0 : index
    %c0_2 = arith.constant 0 : index
    %1 = vector.load %arg2[%c0_1, %c0_2] : memref<32x32xf32, #tpu.memory_space<vmem>>, vector<32x32xf32>
    %c0_3 = arith.constant 0 : index
    %c0_4 = arith.constant 0 : index
    %2 = vector.load %arg3[%c0_3, %c0_4] : memref<32x32xf32, #tpu.memory_space<vmem>>, vector<32x32xf32>
    %cst = arith.constant dense<0.000000e+00> : vector<32x32xf32>
    %3 = tpu.matmul %0, %2, %cst {dimension_numbers = #tpu.dot_dimension_numbers<[1], [0], [0], [1], [0, 0, 1, 1], [], []>} : vector<32x32xf32>, vector<32x32xf32>, vector<32x32xf32> -> vector<32x32xf32>
    %c0_5 = arith.constant 0 : index
    %c0_6 = arith.constant 0 : index
    %4 = vector.load %arg4[%c0_5, %c0_6] : memref<32x32xf32, #tpu.memory_space<vmem>>, vector<32x32xf32>
    %cst_7 = arith.constant dense<0.000000e+00> : vector<32x32xf32>
    %5 = tpu.matmul %1, %4, %cst_7 {dimension_numbers = #tpu.dot_dimension_numbers<[1], [0], [0], [1], [0, 0, 1, 1], [], []>} : vector<32x32xf32>, vector<32x32xf32>, vector<32x32xf32> -> vector<32x32xf32>
    %6 = arith.addf %3, %5 : vector<32x32xf32>
    %c0_8 = arith.constant 0 : index
    %c0_9 = arith.constant 0 : index
    %7 = vector.load %arg6[%c0_8, %c0_9] : memref<1x32xf32, #tpu.memory_space<vmem>>, vector<1x32xf32>
    %8 = vector.broadcast %7 : vector<1x32xf32> to vector<32x32xf32>
    %9 = arith.addf %6, %8 : vector<32x32xf32>
    %c0_10 = arith.constant 0 : index
    %c0_11 = arith.constant 0 : index
    %10 = vector.load %arg5[%c0_10, %c0_11] : memref<32x32xf32, #tpu.memory_space<vmem>>, vector<32x32xf32>
    %cst_12 = arith.constant dense<0.000000e+00> : vector<32x32xf32>
    %11 = tpu.matmul %1, %10, %cst_12 {dimension_numbers = #tpu.dot_dimension_numbers<[1], [0], [0], [1], [0, 0, 1, 1], [], []>} : vector<32x32xf32>, vector<32x32xf32>, vector<32x32xf32> -> vector<32x32xf32>
    %c0_13 = arith.constant 0 : index
    %c0_14 = arith.constant 0 : index
    %12 = vector.load %arg7[%c0_13, %c0_14] : memref<1x32xf32, #tpu.memory_space<vmem>>, vector<1x32xf32>
    %13 = vector.broadcast %12 : vector<1x32xf32> to vector<32x32xf32>
    %14 = arith.addf %11, %13 : vector<32x32xf32>
    %cst_15 = arith.constant dense<0xFF800000> : vector<32xf32>
    %15 = vector.multi_reduction <maximumf>, %9, %cst_15 [1] : vector<32x32xf32> to vector<32xf32>
    %16 = vector.shape_cast %15 : vector<32xf32> to vector<32x1xf32>
    %17 = vector.broadcast %16 : vector<32x1xf32> to vector<32x32xf32>
    %18 = arith.subf %9, %17 : vector<32x32xf32>
    %19 = math.exp %18 : vector<32x32xf32>
    %cst_16 = arith.constant dense<0.000000e+00> : vector<32xf32>
    %20 = vector.multi_reduction <add>, %19, %cst_16 [1] : vector<32x32xf32> to vector<32xf32>
    %21 = vector.shape_cast %20 : vector<32xf32> to vector<32x1xf32>
    %22 = tpu.reciprocal %21 {approx = true} : vector<32x1xf32> -> vector<32x1xf32>
    %23 = arith.mulf %21, %22 : vector<32x1xf32>
    %cst_17 = arith.constant 2.000000e+00 : f32
    %24 = vector.broadcast %cst_17 : f32 to vector<32x1xf32>
    %25 = arith.subf %24, %23 : vector<32x1xf32>
    %26 = arith.mulf %22, %25 : vector<32x1xf32>
    %27 = arith.mulf %19, %14 : vector<32x32xf32>
    %28 = vector.broadcast %26 : vector<32x1xf32> to vector<32x32xf32>
    %29 = arith.mulf %27, %28 : vector<32x32xf32>
    %c0_18 = arith.constant 0 : index
    %c0_19 = arith.constant 0 : index
    %30 = vector.load %arg9[%c0_18, %c0_19] : memref<32x32xf32, #tpu.memory_space<vmem>>, vector<32x32xf32>
    tpu.vector_store %arg9[%c0_18, %c0_19], %29 {strides = array<i32>} : memref<32x32xf32, #tpu.memory_space<vmem>>, vector<32x32xf32>,
    %c0_20 = arith.constant 0 : index
    %c0_21 = arith.constant 0 : index
    %31 = tpu.strided_load %arg9[%c0_20, %c0_21] {strides = array<i32: 4, 1>} : memref<32x32xf32, #tpu.memory_space<vmem>>, vector<8x32xf32>
    %c1 = arith.constant 1 : index
    %c0_22 = arith.constant 0 : index
    %32 = tpu.strided_load %arg9[%c1, %c0_22] {strides = array<i32: 4, 1>} : memref<32x32xf32, #tpu.memory_space<vmem>>, vector<8x32xf32>
    %c2 = arith.constant 2 : index
    %c0_23 = arith.constant 0 : index
    %33 = tpu.strided_load %arg9[%c2, %c0_23] {strides = array<i32: 4, 1>} : memref<32x32xf32, #tpu.memory_space<vmem>>, vector<8x32xf32>
    %c3 = arith.constant 3 : index
    %c0_24 = arith.constant 0 : index
    %34 = tpu.strided_load %arg9[%c3, %c0_24] {strides = array<i32: 4, 1>} : memref<32x32xf32, #tpu.memory_space<vmem>>, vector<8x32xf32>
    %35 = tpu.concatenate %31, %32, %33, %34 in 1 : vector<8x32xf32>, vector<8x32xf32>, vector<8x32xf32>, vector<8x32xf32> -> vector<8x128xf32>
    %c0_25 = arith.constant 0 : index
    %c0_26 = arith.constant 0 : index
    %36 = vector.load %arg8[%c0_25, %c0_26] : memref<8x128xf32, #tpu.memory_space<vmem>>, vector<8x128xf32>
    tpu.vector_store %arg8[%c0_25, %c0_26], %35 {strides = array<i32>} : memref<8x128xf32, #tpu.memory_space<vmem>>, vector<8x128xf32>,
    return
  }
  func.func @transform_0(%arg0: i32) -> (i32, i32) {
    %c0_i32 = arith.constant 0 : i32
    %c0_i32_0 = arith.constant 0 : i32
    return %arg0, %c0_i32 : i32, i32
  }
  func.func @transform_1(%arg0: i32) -> (i32, i32) {
    %c0_i32 = arith.constant 0 : i32
    %c0_i32_0 = arith.constant 0 : i32
    return %arg0, %c0_i32 : i32, i32
  }
  func.func @transform_2(%arg0: i32) -> (i32, i32) {
    %c0_i32 = arith.constant 0 : i32
    %c0_i32_0 = arith.constant 0 : i32
    %c0_i32_1 = arith.constant 0 : i32
    return %c0_i32, %c0_i32_0 : i32, i32
  }
  func.func @transform_3(%arg0: i32) -> (i32, i32) {
    %c0_i32 = arith.constant 0 : i32
    %c0_i32_0 = arith.constant 0 : i32
    %c0_i32_1 = arith.constant 0 : i32
    return %c0_i32, %c0_i32_0 : i32, i32
  }
  func.func @transform_4(%arg0: i32) -> (i32, i32) {
    %c0_i32 = arith.constant 0 : i32
    %c0_i32_0 = arith.constant 0 : i32
    %c0_i32_1 = arith.constant 0 : i32
    return %c0_i32, %c0_i32_0 : i32, i32
  }
  func.func @transform_5(%arg0: i32) -> (i32, i32) {
    %c0_i32 = arith.constant 0 : i32
    %c0_i32_0 = arith.constant 0 : i32
    %c0_i32_1 = arith.constant 0 : i32
    return %c0_i32, %c0_i32_0 : i32, i32
  }
  func.func @transform_6(%arg0: i32) -> (i32, i32) {
    %c0_i32 = arith.constant 0 : i32
    %c0_i32_0 = arith.constant 0 : i32
    %c0_i32_1 = arith.constant 0 : i32
    return %c0_i32, %c0_i32_0 : i32, i32
  }
  func.func @transform_7(%arg0: i32) -> (i32, i32) {
    %c0_i32 = arith.constant 0 : i32
    %c0_i32_0 = arith.constant 0 : i32
    return %arg0, %c0_i32 : i32, i32
  }
}

</mosaic_0001>

<llo_original>
// kernel: tpu_custom_call.1
$region0: #{tpu_custom_call.1}
  #allocation0 [shape = 'u32[]', space=smem, size = 0x4, offset = 0x4, fixed_abs, tag = 'smem constant byte address 0x4 - core index']
  #allocation1 [shape = 'u32[72,128]{1,0:T(1,128)}', space=vmem, size = 0x9000, scoped, tag = 'internal scratch']
  #allocation2 [shape = 'f32[32,32]{1,0:T(8,128)}', space=vmem, size = 0x4000, scoped, tag = 'scratch operand']
  %s0 = inlined_call_operand.hbm [shape: f32[16,32], index: 0, kind: input, shape index: {}]
  %s1 = inlined_call_operand.hbm [shape: f32[16,32], index: 1, kind: input, shape index: {}]
  %s2 = inlined_call_operand.hbm [shape: f32[32,32], index: 2, kind: input, shape index: {}]
  %s3 = inlined_call_operand.hbm [shape: f32[32,32], index: 3, kind: input, shape index: {}]
  %s4 = inlined_call_operand.hbm [shape: f32[32,32], index: 4, kind: input, shape index: {}]
  %s5 = inlined_call_operand.vmem [shape: f32[1,32], index: 5, kind: input, shape index: {}]
  %s6 = inlined_call_operand.vmem [shape: f32[1,32], index: 6, kind: input, shape index: {}]
  %s7 = inlined_call_operand.hbm [shape: f32[4,128], index: 7, kind: output, shape index: {}]
  %s8 = sld [smem:[#allocation0]]
  $region58: #{tpu_custom_call.1} parent=0
    _
  %s10 = ssub.s32 1, %s8
  %s11 = scalar_select 0, %s10, %s8
  $region1: #{tpu_custom_call.1} parent=0
    #allocation3 [shape = 'u8[16384]{0}', space=vmem, size = 0x4000, scoped, tag = 'input window, operand 0, single buffered']
    #allocation4 [shape = 's32[1]{0}', space=sflag, size = 0x4, scoped, tag = 'scoped memory for tpu_custom_call.1']
    #allocation5 [shape = 's32[1]{0}', space=sflag, size = 0x4, scoped, tag = 'scoped memory for tpu_custom_call.1']
    #allocation6 [shape = 'u8[16384]{0}', space=vmem, size = 0x4000, scoped, tag = 'input window, operand 1, single buffered']
    #allocation7 [shape = 's32[1]{0}', space=sflag, size = 0x4, scoped, tag = 'scoped memory for tpu_custom_call.1']
    #allocation8 [shape = 'u8[16384]{0}', space=vmem, size = 0x4000, scoped, tag = 'input window, operand 2, single buffered']
    #allocation9 [shape = 'u8[16384]{0}', space=vmem, size = 0x4000, scoped, tag = 'input window, operand 3, single buffered']
    #allocation10 [shape = 's32[1]{0}', space=sflag, size = 0x4, scoped, tag = 'scoped memory for tpu_custom_call.1']
    #allocation11 [shape = 'u8[16384]{0}', space=vmem, size = 0x4000, scoped, tag = 'input window, operand 4, single buffered']
    #allocation12 [shape = 'u8[4096]{0}', space=vmem, size = 0x1000, scoped, tag = 'output window, operand 0, single buffered']
    %12 = vsyncpa [#allocation4], 0
    %13 = vsyncpa [#allocation7], 0
    %14 = vsyncpa [#allocation10], 0
    %15 = vsyncpa [#allocation5], 0
    // Predicated region
    $region2: #{tpu_custom_call.1} parent=1 // pred_check
      _
    $region3: #{tpu_custom_call.1} parent=1 // pred_check_branch
      %17 = sbr.rel (0) target = $region5
    $region4: #{tpu_custom_call.1} parent=1 // pred_region
      %19 = vsyncadd [#allocation4], 256
      %s20 = sshll.u32 %s0, 4
      %s21 = int_to_ptr.hbm [resolvable:$true] %s20
      %s22 = sshll.u32 [#allocation3], 4
      %s23 = int_to_ptr.vmem [resolvable:$true] %s22
      %28 = dma.hbm_to_vmem [thread:$0]  %s21, 256, %s23, [#allocation4], 128, 128, 8
    $region5: #{tpu_custom_call.1} parent=1 // pred_fallthru
      _
    // Predicated region
    $region6: #{tpu_custom_call.1} parent=1 // pred_check
      _
    $region7: #{tpu_custom_call.1} parent=1 // pred_check_branch
      %30 = sbr.rel (0) target = $region9
    $region8: #{tpu_custom_call.1} parent=1 // pred_region
      %32 = vsyncadd [#allocation7], 256
      %s33 = sshll.u32 %s1, 4
      %s34 = int_to_ptr.hbm [resolvable:$true] %s33
      %s35 = sshll.u32 [#allocation6], 4
      %s36 = int_to_ptr.vmem [resolvable:$true] %s35
      %41 = dma.hbm_to_vmem [thread:$0]  %s34, 256, %s36, [#allocation7], 128, 128, 8
    $region9: #{tpu_custom_call.1} parent=1 // pred_fallthru
      _
    // Predicated region
    $region10: #{tpu_custom_call.1} parent=1 // pred_check
      _
    $region11: #{tpu_custom_call.1} parent=1 // pred_check_branch
      %43 = sbr.rel (0) target = $region13
    $region12: #{tpu_custom_call.1} parent=1 // pred_region
      %45 = vsyncadd [#allocation7], 0
      %s46 = sshll.u32 %s2, 4
      %s47 = int_to_ptr.hbm [resolvable:$true] %s46
      %s48 = sshll.u32 [#allocation8], 4
      %s49 = int_to_ptr.vmem [resolvable:$true] %s48
      %54 = dma.hbm_to_vmem [thread:$0]  %s47, 512, %s49, [#allocation7], 128, 128, 8
    $region13: #{tpu_custom_call.1} parent=1 // pred_fallthru
      _
    // Predicated region
    $region14: #{tpu_custom_call.1} parent=1 // pred_check
      _
    $region15: #{tpu_custom_call.1} parent=1 // pred_check_branch
      %56 = sbr.rel (0) target = $region17
    $region16: #{tpu_custom_call.1} parent=1 // pred_region
      %58 = vsyncadd [#allocation10], 0
      %s59 = sshll.u32 %s3, 4
      %s60 = int_to_ptr.hbm [resolvable:$true] %s59
      %s61 = sshll.u32 [#allocation9], 4
      %s62 = int_to_ptr.vmem [resolvable:$true] %s61
      %67 = dma.hbm_to_vmem [thread:$0]  %s60, 512, %s62, [#allocation10], 128, 128, 8
    $region17: #{tpu_custom_call.1} parent=1 // pred_fallthru
      _
    // Predicated region
    $region18: #{tpu_custom_call.1} parent=1 // pred_check
      _
    $region19: #{tpu_custom_call.1} parent=1 // pred_check_branch
      %69 = sbr.rel (0) target = $region21
    $region20: #{tpu_custom_call.1} parent=1 // pred_region
      %71 = vsyncadd [#allocation10], 0
      %s72 = sshll.u32 %s4, 4
      %s73 = int_to_ptr.hbm [resolvable:$true] %s72
      %s74 = sshll.u32 [#allocation11], 4
      %s75 = int_to_ptr.vmem [resolvable:$true] %s74
      %80 = dma.hbm_to_vmem [thread:$0]  %s73, 512, %s75, [#allocation10], 128, 128, 8
    $region21: #{tpu_custom_call.1} parent=1 // pred_fallthru
      _
    // Predicated region
    $region22: #{tpu_custom_call.1} parent=1 // pred_check
      _
    $region23: #{tpu_custom_call.1} parent=1 // pred_check_branch
      %82 = sbr.rel (0) target = $region25
    $region24: #{tpu_custom_call.1} parent=1 // pred_region
      _
    $region25: #{tpu_custom_call.1} parent=1 // pred_fallthru
      _
    // Predicated region
    $region26: #{tpu_custom_call.1} parent=1 // pred_check
      _
    $region27: #{tpu_custom_call.1} parent=1 // pred_check_branch
      %84 = sbr.rel (0) target = $region29
    $region28: #{tpu_custom_call.1} parent=1 // pred_region
      _
    $region29: #{tpu_custom_call.1} parent=1 // pred_fallthru
      _
    // Predicated region
    $region30: #{tpu_custom_call.1} parent=1 // pred_check
      _
    $region31: #{tpu_custom_call.1} parent=1 // pred_check_branch
      %86 = sbr.rel (0) target = $region33
    $region32: #{tpu_custom_call.1} parent=1 // pred_region
      %88 = dma.done [#allocation4], 512
    $region33: #{tpu_custom_call.1} parent=1 // pred_fallthru
      _
    // Predicated region
    $region34: #{tpu_custom_call.1} parent=1 // pred_check
      _
    $region35: #{tpu_custom_call.1} parent=1 // pred_check_branch
      %90 = sbr.rel (0) target = $region37
    $region36: #{tpu_custom_call.1} parent=1 // pred_region
      %92 = dma.done [#allocation7], 512
    $region37: #{tpu_custom_call.1} parent=1 // pred_fallthru
      _
    // Predicated region
    $region38: #{tpu_custom_call.1} parent=1 // pred_check
      _
    $region39: #{tpu_custom_call.1} parent=1 // pred_check_branch
      %94 = sbr.rel (0) target = $region41
    $region40: #{tpu_custom_call.1} parent=1 // pred_region
      %96 = dma.done [#allocation7], 512
    $region41: #{tpu_custom_call.1} parent=1 // pred_fallthru
      _
    // Predicated region
    $region42: #{tpu_custom_call.1} parent=1 // pred_check
      _
    $region43: #{tpu_custom_call.1} parent=1 // pred_check_branch
      %98 = sbr.rel (0) target = $region45
    $region44: #{tpu_custom_call.1} parent=1 // pred_region
      %100 = dma.done [#allocation10], 512
    $region45: #{tpu_custom_call.1} parent=1 // pred_fallthru
      _
    // Predicated region
    $region46: #{tpu_custom_call.1} parent=1 // pred_check
      _
    $region47: #{tpu_custom_call.1} parent=1 // pred_check_branch
      %102 = sbr.rel (0) target = $region49
    $region48: #{tpu_custom_call.1} parent=1 // pred_region
      %104 = dma.done [#allocation10], 512
    $region49: #{tpu_custom_call.1} parent=1 // pred_fallthru
      _
    %v105 = vld [vmem:[#allocation3] sm:$0xff]
    %v106 = vld [vmem:[#allocation3 + $0x8] sm:$0xff]
    %v107 = vld [vmem:[#allocation3 + $0x10] sm:$0xff]
    %v108 = vld [vmem:[#allocation3 + $0x18] sm:$0xff]
    %v109 = vld [vmem:[#allocation6] sm:$0xff]
    %v110 = vld [vmem:[#allocation6 + $0x8] sm:$0xff]
    %v111 = vld [vmem:[#allocation6 + $0x10] sm:$0xff]
    %v112 = vld [vmem:[#allocation6 + $0x18] sm:$0xff]
    %v113 = vld [vmem:[#allocation8] sm:$0xff]
    %v114 = vld [vmem:[#allocation8 + $0x8] sm:$0xff]
    %v115 = vld [vmem:[#allocation8 + $0x10] sm:$0xff]
    %v116 = vld [vmem:[#allocation8 + $0x18] sm:$0xff]
    %v117 = vld [vmem:[#allocation9] sm:$0xff]
    %v118 = vld [vmem:[#allocation9 + $0x8] sm:$0xff]
    %v119 = vld [vmem:[#allocation9 + $0x10] sm:$0xff]
    %v120 = vld [vmem:[#allocation9 + $0x18] sm:$0xff]
    %vm121 = vcmask 261120
    %v123 = vsel %vm121, %v109, 0
    %v126 = vsel %vm121, %v110, 0
    %v129 = vsel %vm121, %v111, 0
    %v132 = vsel %vm121, %v112, 0
    %134 = vmatpush.msra.mxu0 0.0
    %135 = vmatpush.msra.mxu0 0.0
    %136 = vmatpush.msra.mxu0 0.0
    %137 = vmatpush.msra.mxu0 0.0
    %138 = vmatpush.msra.mxu0 0.0
    %139 = vmatpush.msra.mxu0 0.0
    %140 = vmatpush.msra.mxu0 0.0
    %141 = vmatpush.msra.mxu0 0.0
    %142 = vmatpush.msra.mxu0 0.0
    %143 = vmatpush.msra.mxu0 0.0
    %144 = vmatpush.msra.mxu0 0.0
    %145 = vmatpush.msra.mxu0 0.0
    %146 = vmatpush.msra.mxu0 %v120
    %147 = vmatpush.msra.mxu0 %v119
    %148 = vmatpush.msra.mxu0 %v118
    %149 = vmatpush.msra.mxu0 %v117
    %150 = vmatmul.f32.gmra.mxu0 %v123
    %v151 = vpop.f32.mrf.mxu0
    %v152 = vadd.f32 0.0, %v151
    %153 = vmatmul.f32.gmra.mxu0 %v126
    %v154 = vpop.f32.mrf.mxu0
    %v155 = vadd.f32 0.0, %v154
    %156 = vmatmul.f32.gmra.mxu0 %v129
    %v157 = vpop.f32.mrf.mxu0
    %v158 = vadd.f32 0.0, %v157
    %159 = vmatmul.f32.gmra.mxu0 %v132
    %v160 = vpop.f32.mrf.mxu0
    %v161 = vadd.f32 0.0, %v160
    %162 = vdwg.mxu0
    %v164 = vsel %vm121, %v105, 0
    %v167 = vsel %vm121, %v106, 0
    %v170 = vsel %vm121, %v107, 0
    %v173 = vsel %vm121, %v108, 0
    %175 = vmatpush.msra.mxu0 0.0
    %176 = vmatpush.msra.mxu0 0.0
    %177 = vmatpush.msra.mxu0 0.0
    %178 = vmatpush.msra.mxu0 0.0
    %179 = vmatpush.msra.mxu0 0.0
    %180 = vmatpush.msra.mxu0 0.0
    %181 = vmatpush.msra.mxu0 0.0
    %182 = vmatpush.msra.mxu0 0.0
    %183 = vmatpush.msra.mxu0 0.0
    %184 = vmatpush.msra.mxu0 0.0
    %185 = vmatpush.msra.mxu0 0.0
    %186 = vmatpush.msra.mxu0 0.0
    %187 = vmatpush.msra.mxu0 %v116
    %188 = vmatpush.msra.mxu0 %v115
    %189 = vmatpush.msra.mxu0 %v114
    %190 = vmatpush.msra.mxu0 %v113
    %191 = vmatmul.f32.gmra.mxu0 %v164
    %v192 = vpop.f32.mrf.mxu0
    %v193 = vadd.f32 %v152, %v192
    %194 = vmatmul.f32.gmra.mxu0 %v167
    %v195 = vpop.f32.mrf.mxu0
    %v196 = vadd.f32 %v155, %v195
    %197 = vmatmul.f32.gmra.mxu0 %v170
    %v198 = vpop.f32.mrf.mxu0
    %v199 = vadd.f32 %v158, %v198
    %200 = vmatmul.f32.gmra.mxu0 %v173
    %v201 = vpop.f32.mrf.mxu0
    %v202 = vadd.f32 %v161, %v201
    %203 = vdwg.mxu0
    %v204 = vld [vmem:[%s5] sm:$0x1]
    %v206 = vperm.slane %v204, 0
    %v208 = vadd.f32 %v193, %v206
    %v209 = vadd.f32 %v196, %v206
    %v210 = vadd.f32 %v199, %v206
    %v211 = vadd.f32 %v202, %v206
    %v212 = vld [vmem:[#allocation11] sm:$0xff]
    %v213 = vld [vmem:[#allocation11 + $0x8] sm:$0xff]
    %v214 = vld [vmem:[#allocation11 + $0x10] sm:$0xff]
    %v215 = vld [vmem:[#allocation11 + $0x18] sm:$0xff]
    %v216 = vld [vmem:[%s6] sm:$0x1]
    %v218 = vperm.slane %v216, 0
    %220 = vmatpush.msra.mxu0 0.0
    %221 = vmatpush.msra.mxu0 0.0
    %222 = vmatpush.msra.mxu0 0.0
    %223 = vmatpush.msra.mxu0 0.0
    %224 = vmatpush.msra.mxu0 0.0
    %225 = vmatpush.msra.mxu0 0.0
    %226 = vmatpush.msra.mxu0 0.0
    %227 = vmatpush.msra.mxu0 0.0
    %228 = vmatpush.msra.mxu0 0.0
    %229 = vmatpush.msra.mxu0 0.0
    %230 = vmatpush.msra.mxu0 0.0
    %231 = vmatpush.msra.mxu0 0.0
    %232 = vmatpush.msra.mxu0 %v215
    %233 = vmatpush.msra.mxu0 %v214
    %234 = vmatpush.msra.mxu0 %v213
    %235 = vmatpush.msra.mxu0 %v212
    %236 = vmatmul.f32.gmra.mxu0 %v123
    %v237 = vpop.f32.mrf.mxu0
    %v238 = vadd.f32 %v218, %v237
    %239 = vmatmul.f32.gmra.mxu0 %v126
    %v240 = vpop.f32.mrf.mxu0
    %v241 = vadd.f32 %v218, %v240
    %242 = vmatmul.f32.gmra.mxu0 %v129
    %v243 = vpop.f32.mrf.mxu0
    %v244 = vadd.f32 %v218, %v243
    %245 = vmatmul.f32.gmra.mxu0 %v132
    %v246 = vpop.f32.mrf.mxu0
    %v247 = vadd.f32 %v218, %v246
    %248 = vdwg.mxu0
    %v249 = vsel %vm121, %v208, -inf
    %250 = vmax.xlane.f32.xlu0 %v249
    %v251 = vpop.xlane.xlu0 %250
    %v252 = vsel %vm121, %v209, -inf
    %253 = vmax.xlane.f32.xlu0 %v252
    %v254 = vpop.xlane.xlu0 %253
    %v255 = vsel %vm121, %v210, -inf
    %256 = vmax.xlane.f32.xlu0 %v255
    %v257 = vpop.xlane.xlu0 %256
    %v258 = vsel %vm121, %v211, -inf
    %259 = vmax.xlane.f32.xlu0 %v258
    %v260 = vpop.xlane.xlu0 %259
    %v261 = vsub.f32 %v208, %v251
    %v262 = vsub.f32 %v209, %v254
    %v263 = vsub.f32 %v210, %v257
    %v264 = vsub.f32 %v211, %v260
    %v265 = vmul.f32 %v261, 1.442695
    %v266 = vpow.pop %v265
    %v267 = vmul.f32 %v262, 1.442695
    %v268 = vpow.pop %v267
    %v269 = vmul.f32 %v263, 1.442695
    %v270 = vpow.pop %v269
    %v271 = vmul.f32 %v264, 1.442695
    %v272 = vpow.pop %v271
    %v273 = vsel %vm121, %v266, 0.0
    %274 = vadd.xlane.f32.xlu0 %v273
    %v275 = vpop.xlane.xlu0 %274
    %v276 = vsel %vm121, %v268, 0.0
    %277 = vadd.xlane.f32.xlu0 %v276
    %v278 = vpop.xlane.xlu0 %277
    %v279 = vsel %vm121, %v270, 0.0
    %280 = vadd.xlane.f32.xlu0 %v279
    %v281 = vpop.xlane.xlu0 %280
    %v282 = vsel %vm121, %v272, 0.0
    %283 = vadd.xlane.f32.xlu0 %v282
    %v284 = vpop.xlane.xlu0 %283
    %v285 = vrcp.pop %v275
    %v286 = vrcp.pop %v278
    %v287 = vrcp.pop %v281
    %v288 = vrcp.pop %v284
    %v289 = vmul.f32 %v275, %v285
    %v290 = vmul.f32 %v278, %v286
    %v291 = vmul.f32 %v281, %v287
    %v292 = vmul.f32 %v284, %v288
    %v293 = vsub.f32 2.0, %v289
    %v294 = vsub.f32 2.0, %v290
    %v295 = vsub.f32 2.0, %v291
    %v296 = vsub.f32 2.0, %v292
    %v297 = vmul.f32 %v285, %v293
    %v298 = vmul.f32 %v286, %v294
    %v299 = vmul.f32 %v287, %v295
    %v300 = vmul.f32 %v288, %v296
    %v301 = vmul.f32 %v266, %v238
    %v302 = vmul.f32 %v268, %v241
    %v303 = vmul.f32 %v270, %v244
    %v304 = vmul.f32 %v272, %v247
    %v305 = vmul.f32 %v301, %v297
    %v306 = vmul.f32 %v302, %v298
    %v307 = vmul.f32 %v303, %v299
    %v308 = vmul.f32 %v304, %v300
    %309 = vst.msk [vmem:[#allocation2] sm:$0xff] %vm121, %v305
    %310 = vst.msk [vmem:[#allocation2 + $0x8] sm:$0xff] %vm121, %v306
    %311 = vst.msk [vmem:[#allocation2 + $0x10] sm:$0xff] %vm121, %v307
    %312 = vst.msk [vmem:[#allocation2 + $0x18] sm:$0xff] %vm121, %v308
    %v313 = vld [vmem:[#allocation2] ss:$4 sm:$0xff]
    %s314 = scalar_lea.vmem [#allocation2], 1
    %v315 = vld [vmem:[%s314] ss:$4 sm:$0xff]
    %s316 = scalar_lea.vmem [#allocation2], 2
    %v317 = vld [vmem:[%s316] ss:$4 sm:$0xff]
    %s318 = scalar_lea.vmem [#allocation2], 3
    %v319 = vld [vmem:[%s318] ss:$4 sm:$0xff]
    %321 = vrot.lane.b32.xlu0 %v315, 32
    %v322 = vpop.permute.xlu0 %321
    %325 = vrot.lane.b32.xlu0 %v317, 64
    %v326 = vpop.permute.xlu0 %325
    %329 = vrot.lane.b32.xlu0 %v319, 96
    %v330 = vpop.permute.xlu0 %329
    %v332 = vsel %vm121, %v313, %v322
    %vm333 = vcmask 523264
    %v334 = vsel %vm333, %v332, %v326
    %vm335 = vcmask 785408
    %v336 = vsel %vm335, %v334, %v330
    %337 = vst [vmem:[#allocation12] sm:$0xff] %v336
    // Predicated region
    $region50: #{tpu_custom_call.1} parent=1 // pred_check
      _
    $region51: #{tpu_custom_call.1} parent=1 // pred_check_branch
      %339 = sbr.rel (0) target = $region53
    $region52: #{tpu_custom_call.1} parent=1 // pred_region
      %341 = vsyncadd [#allocation5], 64
      %s342 = sshll.u32 [#allocation12], 4
      %s343 = int_to_ptr.vmem [resolvable:$true] %s342
      %s344 = sshll.u32 %s7, 4
      %s345 = int_to_ptr.hbm [resolvable:$true] %s344
      %350 = dma.vmem_to_hbm [thread:$0]  %s343, 64, %s345, [#allocation5], 64, 64, 4
    $region53: #{tpu_custom_call.1} parent=1 // pred_fallthru
      _
    // Predicated region
    $region54: #{tpu_custom_call.1} parent=1 // pred_check
      _
    $region55: #{tpu_custom_call.1} parent=1 // pred_check_branch
      %352 = sbr.rel (0) target = $region57
    $region56: #{tpu_custom_call.1} parent=1 // pred_region
      %354 = dma.done [#allocation5], 128
    $region57: #{tpu_custom_call.1} parent=1 // pred_fallthru
      _
    %355 = vsyncpa [#allocation4], 1
    %356 = vsyncpa [#allocation7], 1
    %357 = vsyncpa [#allocation10], 1
    %358 = vsyncpa [#allocation5], 1

</llo_original>
